<compile_context>
chip_gen: v6e
topology: v6e:2x2x1
jax: 0.10.0
libtpu: 0.0.40
codegen_flags: <defaults>
</compile_context>

<pallas_src>
import functools
import math

import jax
import jax.numpy as jnp
from jax.experimental import pallas as pl
from jax.experimental.pallas import tpu as pltpu


def _round_up(x, m):
    return ((x + m - 1) // m) * m


def _vmem_budget():
    """Generation-aware scoped-VMEM budget for tile sizing."""
    cap = 128 * 1024 * 1024
    try:
        cap = int(pltpu.get_tpu_info().vmem_capacity_bytes)
    except Exception:
        pass
    if cap <= 80 * 1024 * 1024:          # v7x-class: 64 MiB per TensorCore
        return 42 * 1024 * 1024
    return 96 * 1024 * 1024              # v5e / v6e: 128 MiB


def _footprint_bytes(tb, tk, td, nd, cbytes, obytes):
    # Double-buffered x / W / out tiles + f32 accumulator (nd > 1 only),
    # plus a small allowance for compiler-internal scratch.
    f = 2 * tb * td * cbytes + 2 * td * tk * cbytes + 2 * tb * tk * obytes
    if nd > 1:
        f += tb * tk * 4
    return f + (2 << 20)


def _pick_tb(B, tk, td, nd, cbytes, obytes, budget):
    cands = [t for t in (512, 256, 128, 64, 32, 16)
             if _footprint_bytes(t, tk, td, nd, cbytes, obytes) <= budget]
    if not cands:
        cands = [16]
    # Largest tile whose batch-padding waste stays small; else minimal padding.
    for t in cands:
        if _round_up(B, t) - B <= max(B // 8, 16):
            return t
    return min(cands, key=lambda t: (_round_up(B, t), -t))


# ---------------------------- kernels ----------------------------------------

def _proto_kernel_direct(x_ref, w_ref, o_ref):
    # Single reduction step: straight MXU feed, f32 accumulation, direct store.
    o_ref[...] = jnp.dot(
        x_ref[...], w_ref[...], preferred_element_type=jnp.float32
    ).astype(o_ref.dtype)


def _proto_kernel_acc(x_ref, w_ref, o_ref, acc_ref):
    # Tiled contraction: resident f32 accumulator, init/store gated on the
    # (last, "arbitrary") reduction axis.
    @pl.when(pl.program_id(2) == 0)
    def _():
        acc_ref[...] = jnp.zeros_like(acc_ref)

    acc_ref[...] += jnp.dot(
        x_ref[...], w_ref[...], preferred_element_type=jnp.float32
    )

    @pl.when(pl.program_id(2) == pl.num_programs(2) - 1)
    def _():
        o_ref[...] = acc_ref[...].astype(o_ref.dtype)


# ---------------------------- fused forward ----------------------------------

@functools.partial(
    jax.jit,
    static_argnames=("tb", "tk", "td", "head_slices", "compute_dtype", "vmem_limit"),
)
def _multi_prototypes_fwd(x, w_t, *, tb, tk, td, head_slices, compute_dtype,
                          vmem_limit):
    """x: (B, D) in caller dtype; w_t: (d_pad, k_pad) in compute dtype."""
    B, D = x.shape
    d_pad, k_pad = w_t.shape
    out_dtype = x.dtype
    cdt = jnp.dtype(compute_dtype)

    b_pad = _round_up(B, tb)
    nb, nk, nd = b_pad // tb, k_pad // tk, d_pad // td

    xp = x.astype(cdt)
    if b_pad != B or d_pad != D:
        xp = jnp.zeros((b_pad, d_pad), cdt).at[:B, :D].set(xp)

    cost = pl.CostEstimate(
        flops=2 * b_pad * d_pad * k_pad,
        transcendentals=0,
        bytes_accessed=int(
            xp.size * xp.dtype.itemsize
            + w_t.size * w_t.dtype.itemsize
            + b_pad * k_pad * jnp.dtype(out_dtype).itemsize
        ),
    )

    if nd == 1:
        # No reduction tiling: direct-store kernel, 2-D grid.
        # Grid order: re-stream the smaller operand, keep the larger resident
        # across the inner loop (when W fully fits, nk == 1 and W is loaded
        # from HBM exactly once for the whole call).
        stream_x = b_pad <= k_pad
        if stream_x:
            grid = (nk, nb)
            x_spec = pl.BlockSpec((tb, td), lambda j, i: (i, 0))
            w_spec = pl.BlockSpec((td, tk), lambda j, i: (0, j))
            o_spec = pl.BlockSpec((tb, tk), lambda j, i: (i, j))
        else:
            grid = (nb, nk)
            x_spec = pl.BlockSpec((tb, td), lambda i, j: (i, 0))
            w_spec = pl.BlockSpec((td, tk), lambda i, j: (0, j))
            o_spec = pl.BlockSpec((tb, tk), lambda i, j: (i, j))

        out_full = pl.pallas_call(
            _proto_kernel_direct,
            out_shape=jax.ShapeDtypeStruct((b_pad, k_pad), out_dtype),
            grid_spec=pltpu.PrefetchScalarGridSpec(
                num_scalar_prefetch=0,
                grid=grid,
                in_specs=[x_spec, w_spec],
                out_specs=o_spec,
            ),
            compiler_params=pltpu.CompilerParams(
                dimension_semantics=("parallel", "parallel"),
                vmem_limit_bytes=vmem_limit,
            ),
            cost_estimate=cost,
        )(xp, w_t)
    else:
        # Tiled contraction: accumulator kernel, reduction axis last.
        out_full = pl.pallas_call(
            _proto_kernel_acc,
            out_shape=jax.ShapeDtypeStruct((b_pad, k_pad), out_dtype),
            grid_spec=pltpu.PrefetchScalarGridSpec(
                num_scalar_prefetch=0,
                grid=(nb, nk, nd),
                in_specs=[
                    pl.BlockSpec((tb, td), lambda i, j, k: (i, k)),
                    pl.BlockSpec((td, tk), lambda i, j, k: (k, j)),
                ],
                out_specs=pl.BlockSpec((tb, tk), lambda i, j, k: (i, j)),
                scratch_shapes=[pltpu.VMEM((tb, tk), jnp.float32)],
            ),
            compiler_params=pltpu.CompilerParams(
                dimension_semantics=("parallel", "parallel", "arbitrary"),
                vmem_limit_bytes=vmem_limit,
            ),
            cost_estimate=cost,
        )(xp, w_t)

    # Slice per-head (unpadded) columns inside the same jit program.
    return tuple(out_full[:B, off:off + k] for off, k in head_slices)


# ---------------------------- module wrapper ----------------------------------

class MultiPrototypes:
    """JAX/Pallas port of fb_swav.MultiPrototypes (bias-free multi-head linear)."""

    def __init__(self, output_dim, nmb_prototypes, key,
                 param_dtype=jnp.float32, compute_dtype=jnp.bfloat16):
        self.output_dim = int(output_dim)
        self.nmb_prototypes = [int(k) for k in nmb_prototypes]
        self.nmb_heads = len(self.nmb_prototypes)
        self.param_dtype = jnp.dtype(param_dtype)
        self.compute_dtype = jnp.dtype(compute_dtype)

        # Deterministic init mimicking torch nn.Linear default:
        # U(-1/sqrt(in_features), 1/sqrt(in_features)); weights stored (K_i, D).
        bound = 1.0 / math.sqrt(output_dim)
        self.weights = []
        for k in self.nmb_prototypes:
            key, sub = jax.random.split(key)
            w = jax.random.uniform(
                sub, (k, output_dim), dtype=jnp.float32,
                minval=-bound, maxval=bound,
            ).astype(self.param_dtype)
            self.weights.append(w)

        # True (unpadded) per-head column offsets into the fused output.
        slices, off = [], 0
        for k in self.nmb_prototypes:
            slices.append((off, k))
            off += k
        k_total = off
        self._head_slices = tuple(slices)

        # D tiling: single reduction step unless the feature dim is very large.
        D = self.output_dim
        if D <= 2048:
            self._td, self._d_pad = D, D
        else:
            self._td = 1024
            self._d_pad = _round_up(D, self._td)
        nd = self._d_pad // self._td

        # K tiling: keep W fully VMEM-resident when the generation-aware budget
        # allows; otherwise the largest 128-multiple tk minimizing K padding.
        self._vmem_budget = _vmem_budget()
        cbytes = self.compute_dtype.itemsize
        obytes = self.param_dtype.itemsize
        k_min = _round_up(k_total, 128)
        cands = sorted(
            {k_min} | {t for t in (4096, 2048, 1024, 512, 256, 128) if t <= k_min},
            reverse=True,
        )
        fitting = [t for t in cands
                   if _footprint_bytes(256, t, self._td, nd, cbytes, obytes)
                   <= self._vmem_budget]
        if not fitting:
            fitting = [128]
        best_k_pad = min(_round_up(k_total, t) for t in fitting)
        self._tk = max(t for t in fitting if _round_up(k_total, t) == best_k_pad)
        k_pad = _round_up(k_total, self._tk)

        # Fused weight: concat heads along K (no per-head padding), pad K_total
        # to k_pad (and D if tiled), transpose ONCE, cast to the compute dtype.
        w_cat = jnp.concatenate([w.astype(jnp.float32) for w in self.weights], axis=0)
        wp = jnp.zeros((k_pad, self._d_pad), dtype=jnp.float32)
        wp = wp.at[:k_total, :D].set(w_cat)
        self._w_t = jnp.asarray(wp.T, dtype=self.compute_dtype)   # (d_pad, k_pad)

    def __call__(self, x):
        B, D = x.shape
        assert D == self.output_dim
        d_pad, k_pad = self._w_t.shape
        nd = d_pad // self._td
        cbytes = self.compute_dtype.itemsize
        obytes = jnp.dtype(x.dtype).itemsize

        # Batch tile: multiple of 16 (bf16 sublane packing), VMEM-budgeted,
        # minimal batch-padding waste (also bounds recompiles to tb buckets).
        tb = _pick_tb(B, self._tk, self._td, nd, cbytes, obytes, self._vmem_budget)
        b_pad = _round_up(B, tb)

        # Keep both v7x TensorCores busy when the batch fits a single tile.
        tk = self._tk
        if b_pad // tb == 1 and k_pad // tk < 2 and tk % 256 == 0:
            tk //= 2

        outs = _multi_prototypes_fwd(
            x, self._w_t,
            tb=tb, tk=tk, td=self._td,
            head_slices=self._head_slices,
            compute_dtype=self.compute_dtype.name,
            vmem_limit=self._vmem_budget,
        )
        return list(outs)


if __name__ == "__main__":
    key = jax.random.PRNGKey(0)
    k_x, k_params = jax.random.split(key)

    batch = 8
    output_dim = 32
    nmb_prototypes = [16, 32, 8]

    x = jax.random.normal(k_x, (batch, output_dim), dtype=jnp.float32)

    model = MultiPrototypes(output_dim, nmb_prototypes, k_params)
    outs = model(x)
    outs = [jax.block_until_ready(o) for o in outs]

    # Reference: same bf16 MXU feed with f32 accumulation, per head.
    ok = True
    for o, w in zip(outs, model.weights):
        ref = jnp.dot(
            x.astype(jnp.bfloat16), w.astype(jnp.bfloat16).T,
            preferred_element_type=jnp.float32,
        )
        assert o.shape == ref.shape, (o.shape, ref.shape)
        assert o.dtype == jnp.float32
        ok &= bool(jnp.allclose(o, ref, atol=2e-3, rtol=2e-3))
    assert ok, "mismatch vs reference"

    print("KERNEL_OK")
</pallas_src>

<mosaic_0001>
module attributes {stable_mosaic.version = 11 : i64} {
  func.func @_proto_kernel_direct(%arg0: i32, %arg1: i32, %arg2: memref<16x32xbf16, #tpu.memory_space<vmem>>, %arg3: memref<32x128xbf16, #tpu.memory_space<vmem>>, %arg4: memref<16x128xf32, #tpu.memory_space<vmem>>) attributes {dimension_semantics = [#tpu.dimension_semantics<parallel>, #tpu.dimension_semantics<parallel>], iteration_bounds = array<i64: 1, 1>, scalar_prefetch = 0 : i64, scratch_operands = 0 : i64, tpu.core_type = #tpu.core_type<tc>, window_params = [{transform_indices = @transform_0, window_bounds = array<i64: 16, 32>}, {transform_indices = @transform_1, window_bounds = array<i64: 32, 128>}, {transform_indices = @transform_2, window_bounds = array<i64: 16, 128>}]} {
    %c0 = arith.constant 0 : index
    %c0_0 = arith.constant 0 : index
    %0 = vector.load %arg2[%c0, %c0_0] : memref<16x32xbf16, #tpu.memory_space<vmem>>, vector<16x32xbf16>
    %c0_1 = arith.constant 0 : index
    %c0_2 = arith.constant 0 : index
    %1 = vector.load %arg3[%c0_1, %c0_2] : memref<32x128xbf16, #tpu.memory_space<vmem>>, vector<32x128xbf16>
    %cst = arith.constant dense<0.000000e+00> : vector<16x128xf32>
    %2 = tpu.matmul %0, %1, %cst {dimension_numbers = #tpu.dot_dimension_numbers<[1], [0], [0], [1], [0, 0, 1, 1], [], []>} : vector<16x32xbf16>, vector<32x128xbf16>, vector<16x128xf32> -> vector<16x128xf32>
    %c0_3 = arith.constant 0 : index
    %c0_4 = arith.constant 0 : index
    %3 = vector.load %arg4[%c0_3, %c0_4] : memref<16x128xf32, #tpu.memory_space<vmem>>, vector<16x128xf32>
    tpu.vector_store %arg4[%c0_3, %c0_4], %2 {strides = array<i32>} : memref<16x128xf32, #tpu.memory_space<vmem>>, vector<16x128xf32>,
    return
  }
  func.func @transform_0(%arg0: i32, %arg1: i32) -> (i32, i32) {
    %c0_i32 = arith.constant 0 : i32
    %c0_i32_0 = arith.constant 0 : i32
    return %arg1, %c0_i32 : i32, i32
  }
  func.func @transform_1(%arg0: i32, %arg1: i32) -> (i32, i32) {
    %c0_i32 = arith.constant 0 : i32
    %c0_i32_0 = arith.constant 0 : i32
    return %c0_i32, %arg0 : i32, i32
  }
  func.func @transform_2(%arg0: i32, %arg1: i32) -> (i32, i32) {
    %c0_i32 = arith.constant 0 : i32
    return %arg1, %arg0 : i32, i32
  }
}

</mosaic_0001>

<llo_original>
// kernel: _multi_prototypes_fwd.1
$region0: #{_multi_prototypes_fwd.1}
  #allocation0 [shape = 'u32[]', space=smem, size = 0x4, offset = 0x4, fixed_abs, tag = 'smem constant byte address 0x4 - core index']
  #allocation1 [shape = 'u32[144,128]{1,0:T(1,128)}', space=vmem, size = 0x12000, scoped, tag = 'internal scratch']
  %s0 = inlined_call_operand.vmem [shape: bf16[16,32], index: 0, kind: input, shape index: {}]
  %s1 = inlined_call_operand.vmem [shape: bf16[32,128], index: 1, kind: input, shape index: {}]
  %s2 = inlined_call_operand.vmem [shape: f32[16,128], index: 2, kind: output, shape index: {}]
  %s3 = sld [smem:[#allocation0]]
  $region18: #{_multi_prototypes_fwd.1} parent=0
    _
  %s5 = ssub.s32 1, %s3
  %s6 = scalar_select 0, %s5, %s3
  // Predicated region
  $region2: #{_multi_prototypes_fwd.1} parent=0 // pred_check
    _
  $region3: #{_multi_prototypes_fwd.1} parent=0 // pred_check_branch
    %8 = sbr.rel (0) target = $region5
  $region4: #{_multi_prototypes_fwd.1} parent=0 // pred_region
    _
  $region5: #{_multi_prototypes_fwd.1} parent=0 // pred_fallthru
    _
  // Predicated region
  $region6: #{_multi_prototypes_fwd.1} parent=0 // pred_check
    _
  $region7: #{_multi_prototypes_fwd.1} parent=0 // pred_check_branch
    %10 = sbr.rel (0) target = $region9
  $region8: #{_multi_prototypes_fwd.1} parent=0 // pred_region
    _
  $region9: #{_multi_prototypes_fwd.1} parent=0 // pred_fallthru
    _
  %v12 = vld [vmem:[%s0] sm:$0xf]
  %v13 = vld [vmem:[%s0 + $0x4] sm:$0xf]
  %v14 = vld [vmem:[%s1] sm:$0xf]
  %v15 = vld [vmem:[%s1 + $0x4] sm:$0xf]
  %v16 = vld [vmem:[%s1 + $0x8] sm:$0xf]
  %v17 = vld [vmem:[%s1 + $0xc] sm:$0xf]
  %v20 = vunpack.c.l.b16 %v12
  %v21 = vunpack.c.l.b16 %v13
  %v22 = vpack.c.b16 %v21, %v20
  %v27 = vunpack.c.l.b16 %v14
  %v28 = vunpack.c.l.b16 %v15
  %v29 = vunpack.c.l.b16 %v16
  %v30 = vunpack.c.l.b16 %v17
  %v31 = vpack.c.b16 %v28, %v27
  %v32 = vpack.c.b16 %v30, %v29
  %vm35 = vcmask 261120
  %v37 = vsel %vm35, %v22, 0
  %39 = vmatprep.subr.bf16.mxu0 0
  %40 = vmatpush1.bf16.msra.mxu0 0
  %41 = vmatprep.subr.bf16.mxu0 0
  %42 = vmatpush1.bf16.msra.mxu0 0
  %43 = vmatprep.subr.bf16.mxu0 0
  %44 = vmatpush1.bf16.msra.mxu0 0
  %45 = vmatprep.subr.bf16.mxu0 0
  %46 = vmatpush1.bf16.msra.mxu0 0
  %47 = vmatprep.subr.bf16.mxu0 0
  %48 = vmatpush1.bf16.msra.mxu0 0
  %49 = vmatprep.subr.bf16.mxu0 0
  %50 = vmatpush1.bf16.msra.mxu0 0
  %51 = vmatprep.subr.bf16.mxu0 0
  %52 = vmatpush1.bf16.msra.mxu0 %v32
  %53 = vmatprep.subr.bf16.mxu0 0
  %54 = vmatpush1.bf16.msra.mxu0 %v31
  %55 = vmatprep.subr.bf16.mxu0 0
  %56 = vmatpush2.bf16.msra.mxu0 0
  %57 = vmatprep.subr.bf16.mxu0 0
  %58 = vmatpush2.bf16.msra.mxu0 0
  %59 = vmatprep.subr.bf16.mxu0 0
  %60 = vmatpush2.bf16.msra.mxu0 0
  %61 = vmatprep.subr.bf16.mxu0 0
  %62 = vmatpush2.bf16.msra.mxu0 0
  %63 = vmatprep.subr.bf16.mxu0 0
  %64 = vmatpush2.bf16.msra.mxu0 0
  %65 = vmatprep.subr.bf16.mxu0 0
  %66 = vmatpush2.bf16.msra.mxu0 0
  %67 = vmatprep.subr.bf16.mxu0 0
  %68 = vmatpush2.bf16.msra.mxu0 0
  %69 = vmatprep.subr.bf16.mxu0 0
  %70 = vmatpush2.bf16.msra.mxu0 0
  %71 = vmatprep.mubr.bf16.mxu0 0
  %72 = vmatmul.mubr.bf16.gmra.mxu0 %v37
  %v73 = vpop.f32.mrf.mxu0
  %v74 = vadd.f32 0.0, %v73
  %v75 = vpop.f32.mrf.mxu0
  %v76 = vpop.f32.mrf.mxu0
  %v77 = vadd.f32 0.0, %v76
  %v78 = vpop.f32.mrf.mxu0
  %79 = vdwg.mxu0
  %80 = vst [vmem:[%s2] sm:$0xff] %v74
  %81 = vst [vmem:[%s2 + $0x8] sm:$0xff] %v77
  // Predicated region
  $region10: #{_multi_prototypes_fwd.1} parent=0 // pred_check
    _
  $region11: #{_multi_prototypes_fwd.1} parent=0 // pred_check_branch
    %83 = sbr.rel (0) target = $region13
  $region12: #{_multi_prototypes_fwd.1} parent=0 // pred_region
    _
  $region13: #{_multi_prototypes_fwd.1} parent=0 // pred_fallthru
    _
  // Predicated region
  $region14: #{_multi_prototypes_fwd.1} parent=0 // pred_check
    _
  $region15: #{_multi_prototypes_fwd.1} parent=0 // pred_check_branch
    %85 = sbr.rel (0) target = $region17
  $region16: #{_multi_prototypes_fwd.1} parent=0 // pred_region
    _
  $region17: #{_multi_prototypes_fwd.1} parent=0 // pred_fallthru
    _

</llo_original>
